<compile_context>
chip_gen: v6e
topology: v6e:2x2x1
jax: 0.10.0
libtpu: 0.0.40
codegen_flags: <defaults>
</compile_context>

<pallas_src>
import jax
import jax.numpy as jnp
from jax.experimental import pallas as pl
from jax.experimental.pallas import tpu as pltpu

FEAT_DIM = 512          # 512 * BasicBlock.expansion
NUM_CLASSES = 10
ENC_HIDDEN = 15
EXOG_PAD = 16           # exog feature dim padded 10 -> 16 (bf16 sublane pack)
HID_PAD = 128           # encoder hidden padded 15 -> 128 (lane-dense)
OUT_LANES = 8           # output lanes; only column 0 is meaningful
MAX_B_TILE = 256        # fills v6e/v7x MXU M dimension


def combo_tail_kernel(feat_ref, exog_ref,
                      w1_ref, b1_ref, w2_ref, b2_ref,
                      wr_ref, w3_ref, bout_ref,
                      out_ref):
    f32, bf16 = jnp.float32, jnp.bfloat16

    # Encoder MLP; eval-mode BatchNorm1d folded into w1/b1 and w2/b2.
    h = jnp.dot(exog_ref[...], w1_ref[...], preferred_element_type=f32) + b1_ref[...]
    h = jnp.maximum(h, 0.0)
    h = jnp.dot(h.astype(bf16), w2_ref[...], preferred_element_type=f32) + b2_ref[...]
    h = jnp.maximum(h, 0.0)

    # Final fc with the resnet18 classifier head folded in (wrapper-side):
    #   out = feat @ (wr @ wf[:NC]) + (h @ w3) * wf[NC] + (br.wf[:NC] + b3*wf[NC] + bfc)
    out = (jnp.dot(feat_ref[...], wr_ref[...], preferred_element_type=f32)
           + jnp.dot(h.astype(bf16), w3_ref[...], preferred_element_type=f32)
           + bout_ref[...])
    out_ref[...] = out.astype(out_ref.dtype)


def _round_up(x, m):
    return (x + m - 1) // m * m


def _pad_to(a, shape):
    return jnp.pad(a, [(0, s - d) for d, s in zip(a.shape, shape)])


def _choose_b_tile(batch):
    """Largest useful batch tile: multiple of 16 (bf16 sublane packing),
    capped at 256 (MXU M fill), and keeping >= 2 grid steps when possible so
    v7x's two TensorCores both get work."""
    bp16 = _round_up(max(batch, 1), 16)
    if bp16 <= 16:
        return 16
    return min(MAX_B_TILE, _round_up(pl.cdiv(bp16, 2), 16))


def kernel_operands(p):
    """Fold BN + classifier head, pad to MXU-friendly shapes, weights -> bf16."""
    bf16 = jnp.bfloat16
    wf_head = p["wf"][:NUM_CLASSES]                         # (NC,)
    wf_x2 = p["wf"][NUM_CLASSES]                            # scalar
    wr_eff = p["wr"] @ wf_head[:, None]                     # (512, 1)
    w3_eff = p["w3"] * wf_x2                                 # (15, 1)
    bias_out = p["br"] @ wf_head + p["b3"][0] * wf_x2 + p["bfc"][0]
    bout = jnp.zeros((1, OUT_LANES), jnp.float32).at[0, 0].set(bias_out)
    return [
        _pad_to(p["w1f"], (EXOG_PAD, HID_PAD)).astype(bf16),     # (16, 128)
        _pad_to(p["b1f"][None, :], (1, HID_PAD)),                # (1, 128) f32
        _pad_to(p["w2f"], (HID_PAD, HID_PAD)).astype(bf16),      # (128, 128)
        _pad_to(p["b2f"][None, :], (1, HID_PAD)),                # (1, 128) f32
        _pad_to(wr_eff, (FEAT_DIM, OUT_LANES)).astype(bf16),     # (512, 8)
        _pad_to(w3_eff, (HID_PAD, OUT_LANES)).astype(bf16),      # (128, 8)
        bout,                                                    # (1, 8) f32
    ]


def combo_plus_forward(feat, exog, params):
    """feat: (B, 512) backbone avgpool features; exog: (B, NC).  Returns (B, 1)."""
    B = feat.shape[0]
    b_tile = _choose_b_tile(B)
    Bp = _round_up(B, b_tile)

    feat_p = _pad_to(feat.astype(jnp.bfloat16), (Bp, FEAT_DIM))
    exog_p = _pad_to(exog.astype(jnp.bfloat16), (Bp, EXOG_PAD))
    ops = kernel_operands(params)

    row = lambda cols: pl.BlockSpec((b_tile, cols), lambda i: (i, 0))
    full = lambda a: pl.BlockSpec(a.shape, lambda i: (0, 0))

    out_pad = pl.pallas_call(
        combo_tail_kernel,
        out_shape=jax.ShapeDtypeStruct((Bp, OUT_LANES), jnp.float32),
        grid=(Bp // b_tile,),
        in_specs=[row(FEAT_DIM), row(EXOG_PAD)] + [full(a) for a in ops],
        out_specs=row(OUT_LANES),
        compiler_params=pltpu.CompilerParams(
            dimension_semantics=("parallel",)),
    )(feat_p, exog_p, *ops)
    return out_pad[:B, :1]


def make_params(key, eps=1e-5):
    ks = jax.random.split(key, 18)

    def linear(kw, kb, fan_in, fan_out):
        bound = fan_in ** -0.5
        w = jax.random.uniform(kw, (fan_in, fan_out), jnp.float32, -bound, bound)
        b = jax.random.uniform(kb, (fan_out,), jnp.float32, -bound, bound)
        return w, b

    def bn_fold(kg, kb, km, kv, n):
        g = 1.0 + 0.1 * jax.random.normal(kg, (n,), jnp.float32)
        beta = 0.1 * jax.random.normal(kb, (n,), jnp.float32)
        mean = 0.05 * jax.random.normal(km, (n,), jnp.float32)
        var = 1.0 + 0.1 * jnp.abs(jax.random.normal(kv, (n,), jnp.float32))
        scale = g / jnp.sqrt(var + eps)
        shift = beta - mean * scale
        return scale, shift

    # resnet18.fc : Linear(512, NUM_CLASSES)
    wr, br = linear(ks[0], ks[1], FEAT_DIM, NUM_CLASSES)
    # encoder MLP: Linear(NC,15)->BN(15)->ReLU->Linear(15,15)->BN(15)->ReLU->Linear(15,1)
    w1, b1 = linear(ks[2], ks[3], NUM_CLASSES, ENC_HIDDEN)
    s1, t1 = bn_fold(ks[4], ks[5], ks[6], ks[7], ENC_HIDDEN)
    w2, b2 = linear(ks[8], ks[9], ENC_HIDDEN, ENC_HIDDEN)
    s2, t2 = bn_fold(ks[10], ks[11], ks[12], ks[13], ENC_HIDDEN)
    w3, b3 = linear(ks[14], ks[15], ENC_HIDDEN, 1)
    # final fc : Linear(NC + 1, 1)
    wf_mat, bfc = linear(ks[16], ks[17], NUM_CLASSES + 1, 1)
    wf = wf_mat[:, 0]

    # Fold eval-mode BatchNorm1d into the preceding Linear:
    #   BN(x @ W + b) = x @ (W * s) + (b * s + t)
    return dict(
        wr=wr, br=br,
        w1f=w1 * s1[None, :], b1f=b1 * s1 + t1,
        w2f=w2 * s2[None, :], b2f=b2 * s2 + t2,
        w3=w3, b3=b3,
        wf=wf, bfc=bfc,
    )


def reference(feat, exog, p):
    """Plain-JAX eval-mode forward of the module tail (unfolded head / final
    fc, bf16 weights with f32 accumulation like the kernel)."""
    bf16, f32 = jnp.bfloat16, jnp.float32
    mm = lambda a, w: jnp.dot(a.astype(bf16), w.astype(bf16),
                              preferred_element_type=f32)
    x1 = mm(feat, p["wr"]) + p["br"]                         # resnet18.fc
    h = jnp.maximum(mm(exog, p["w1f"]) + p["b1f"], 0.0)      # encoder L1+BN+ReLU
    h = jnp.maximum(mm(h, p["w2f"]) + p["b2f"], 0.0)         # encoder L2+BN+ReLU
    x2 = mm(h, p["w3"]) + p["b3"]                            # encoder L3
    cat = jnp.concatenate([x1, x2], axis=1)                  # (B, NC + 1)
    return mm(cat, p["wf"][:, None]) + p["bfc"]              # final fc


if __name__ == "__main__":
    key = jax.random.PRNGKey(0)
    kf, ke, kp = jax.random.split(key, 3)

    B = 30  # non-multiple of the tile: exercises batch padding + 2 grid steps
    # (B, 512) avgpool features — stands in for resnet18.partial_forward(x) on
    # an image batch x of shape (B, 3, H, W).
    feat = jax.random.normal(kf, (B, FEAT_DIM), jnp.float32)
    exog = jax.random.normal(ke, (B, NUM_CLASSES), jnp.float32)
    params = make_params(kp)

    out = combo_plus_forward(feat, exog, params)
    out = jax.block_until_ready(out)

    ref = reference(feat, exog, params)
    assert out.shape == (B, 1)
    assert jnp.allclose(out, ref, atol=2e-2, rtol=2e-2), (
        float(jnp.max(jnp.abs(out - ref))))

    print("KERNEL_OK")
</pallas_src>

<mosaic_0001>
module attributes {stable_mosaic.version = 11 : i64} {
  func.func @combo_tail_kernel(%arg0: i32, %arg1: memref<16x512xbf16, #tpu.memory_space<vmem>>, %arg2: memref<16x16xbf16, #tpu.memory_space<vmem>>, %arg3: memref<16x128xbf16, #tpu.memory_space<vmem>>, %arg4: memref<1x128xf32, #tpu.memory_space<vmem>>, %arg5: memref<128x128xbf16, #tpu.memory_space<vmem>>, %arg6: memref<1x128xf32, #tpu.memory_space<vmem>>, %arg7: memref<512x8xbf16, #tpu.memory_space<vmem>>, %arg8: memref<128x8xbf16, #tpu.memory_space<vmem>>, %arg9: memref<1x8xf32, #tpu.memory_space<vmem>>, %arg10: memref<16x8xf32, #tpu.memory_space<vmem>>) attributes {dimension_semantics = [#tpu.dimension_semantics<parallel>], iteration_bounds = array<i64: 2>, scalar_prefetch = 0 : i64, scratch_operands = 0 : i64, tpu.core_type = #tpu.core_type<tc>, window_params = [{transform_indices = @transform_0, window_bounds = array<i64: 16, 512>}, {transform_indices = @transform_1, window_bounds = array<i64: 16, 16>}, {pipeline_mode = #tpu.pipeline_mode<synchronous>, transform_indices = @transform_2, window_bounds = array<i64: 16, 128>}, {pipeline_mode = #tpu.pipeline_mode<synchronous>, transform_indices = @transform_3, window_bounds = array<i64: 1, 128>}, {pipeline_mode = #tpu.pipeline_mode<synchronous>, transform_indices = @transform_4, window_bounds = array<i64: 128, 128>}, {pipeline_mode = #tpu.pipeline_mode<synchronous>, transform_indices = @transform_5, window_bounds = array<i64: 1, 128>}, {pipeline_mode = #tpu.pipeline_mode<synchronous>, transform_indices = @transform_6, window_bounds = array<i64: 512, 8>}, {pipeline_mode = #tpu.pipeline_mode<synchronous>, transform_indices = @transform_7, window_bounds = array<i64: 128, 8>}, {pipeline_mode = #tpu.pipeline_mode<synchronous>, transform_indices = @transform_8, window_bounds = array<i64: 1, 8>}, {transform_indices = @transform_9, window_bounds = array<i64: 16, 8>}]} {
    %c0 = arith.constant 0 : index
    %c0_0 = arith.constant 0 : index
    %0 = vector.load %arg2[%c0, %c0_0] : memref<16x16xbf16, #tpu.memory_space<vmem>>, vector<16x16xbf16>
    %c0_1 = arith.constant 0 : index
    %c0_2 = arith.constant 0 : index
    %1 = vector.load %arg3[%c0_1, %c0_2] : memref<16x128xbf16, #tpu.memory_space<vmem>>, vector<16x128xbf16>
    %cst = arith.constant dense<0.000000e+00> : vector<16x128xf32>
    %2 = tpu.matmul %0, %1, %cst {dimension_numbers = #tpu.dot_dimension_numbers<[1], [0], [0], [1], [0, 0, 1, 1], [], []>} : vector<16x16xbf16>, vector<16x128xbf16>, vector<16x128xf32> -> vector<16x128xf32>
    %c0_3 = arith.constant 0 : index
    %c0_4 = arith.constant 0 : index
    %3 = vector.load %arg4[%c0_3, %c0_4] : memref<1x128xf32, #tpu.memory_space<vmem>>, vector<1x128xf32>
    %4 = vector.broadcast %3 : vector<1x128xf32> to vector<16x128xf32>
    %5 = arith.addf %2, %4 : vector<16x128xf32>
    %cst_5 = arith.constant 0.000000e+00 : f32
    %6 = vector.broadcast %cst_5 : f32 to vector<16x128xf32>
    %7 = arith.maximumf %5, %6 : vector<16x128xf32>
    %8 = arith.truncf %7 : vector<16x128xf32> to vector<16x128xbf16>
    %c0_6 = arith.constant 0 : index
    %c0_7 = arith.constant 0 : index
    %9 = vector.load %arg5[%c0_6, %c0_7] : memref<128x128xbf16, #tpu.memory_space<vmem>>, vector<128x128xbf16>
    %cst_8 = arith.constant dense<0.000000e+00> : vector<16x128xf32>
    %10 = tpu.matmul %8, %9, %cst_8 {dimension_numbers = #tpu.dot_dimension_numbers<[1], [0], [0], [1], [0, 0, 1, 1], [], []>} : vector<16x128xbf16>, vector<128x128xbf16>, vector<16x128xf32> -> vector<16x128xf32>
    %c0_9 = arith.constant 0 : index
    %c0_10 = arith.constant 0 : index
    %11 = vector.load %arg6[%c0_9, %c0_10] : memref<1x128xf32, #tpu.memory_space<vmem>>, vector<1x128xf32>
    %12 = vector.broadcast %11 : vector<1x128xf32> to vector<16x128xf32>
    %13 = arith.addf %10, %12 : vector<16x128xf32>
    %cst_11 = arith.constant 0.000000e+00 : f32
    %14 = vector.broadcast %cst_11 : f32 to vector<16x128xf32>
    %15 = arith.maximumf %13, %14 : vector<16x128xf32>
    %c0_12 = arith.constant 0 : index
    %c0_13 = arith.constant 0 : index
    %16 = vector.load %arg1[%c0_12, %c0_13] : memref<16x512xbf16, #tpu.memory_space<vmem>>, vector<16x512xbf16>
    %c0_14 = arith.constant 0 : index
    %c0_15 = arith.constant 0 : index
    %17 = vector.load %arg7[%c0_14, %c0_15] : memref<512x8xbf16, #tpu.memory_space<vmem>>, vector<512x8xbf16>
    %cst_16 = arith.constant dense<0.000000e+00> : vector<16x8xf32>
    %18 = tpu.matmul %16, %17, %cst_16 {dimension_numbers = #tpu.dot_dimension_numbers<[1], [0], [0], [1], [0, 0, 1, 1], [], []>} : vector<16x512xbf16>, vector<512x8xbf16>, vector<16x8xf32> -> vector<16x8xf32>
    %19 = arith.truncf %15 : vector<16x128xf32> to vector<16x128xbf16>
    %c0_17 = arith.constant 0 : index
    %c0_18 = arith.constant 0 : index
    %20 = vector.load %arg8[%c0_17, %c0_18] : memref<128x8xbf16, #tpu.memory_space<vmem>>, vector<128x8xbf16>
    %cst_19 = arith.constant dense<0.000000e+00> : vector<16x8xf32>
    %21 = tpu.matmul %19, %20, %cst_19 {dimension_numbers = #tpu.dot_dimension_numbers<[1], [0], [0], [1], [0, 0, 1, 1], [], []>} : vector<16x128xbf16>, vector<128x8xbf16>, vector<16x8xf32> -> vector<16x8xf32>
    %22 = arith.addf %18, %21 : vector<16x8xf32>
    %c0_20 = arith.constant 0 : index
    %c0_21 = arith.constant 0 : index
    %23 = vector.load %arg9[%c0_20, %c0_21] : memref<1x8xf32, #tpu.memory_space<vmem>>, vector<1x8xf32>
    %24 = vector.broadcast %23 : vector<1x8xf32> to vector<16x8xf32>
    %25 = arith.addf %22, %24 : vector<16x8xf32>
    %c0_22 = arith.constant 0 : index
    %c0_23 = arith.constant 0 : index
    %26 = vector.load %arg10[%c0_22, %c0_23] : memref<16x8xf32, #tpu.memory_space<vmem>>, vector<16x8xf32>
    tpu.vector_store %arg10[%c0_22, %c0_23], %25 {strides = array<i32>} : memref<16x8xf32, #tpu.memory_space<vmem>>, vector<16x8xf32>,
    return
  }
  func.func @transform_0(%arg0: i32) -> (i32, i32) {
    %c0_i32 = arith.constant 0 : i32
    %c0_i32_0 = arith.constant 0 : i32
    return %arg0, %c0_i32 : i32, i32
  }
  func.func @transform_1(%arg0: i32) -> (i32, i32) {
    %c0_i32 = arith.constant 0 : i32
    %c0_i32_0 = arith.constant 0 : i32
    return %arg0, %c0_i32 : i32, i32
  }
  func.func @transform_2(%arg0: i32) -> (i32, i32) {
    %c0_i32 = arith.constant 0 : i32
    %c0_i32_0 = arith.constant 0 : i32
    %c0_i32_1 = arith.constant 0 : i32
    return %c0_i32, %c0_i32_0 : i32, i32
  }
  func.func @transform_3(%arg0: i32) -> (i32, i32) {
    %c0_i32 = arith.constant 0 : i32
    %c0_i32_0 = arith.constant 0 : i32
    %c0_i32_1 = arith.constant 0 : i32
    return %c0_i32, %c0_i32_0 : i32, i32
  }
  func.func @transform_4(%arg0: i32) -> (i32, i32) {
    %c0_i32 = arith.constant 0 : i32
    %c0_i32_0 = arith.constant 0 : i32
    %c0_i32_1 = arith.constant 0 : i32
    return %c0_i32, %c0_i32_0 : i32, i32
  }
  func.func @transform_5(%arg0: i32) -> (i32, i32) {
    %c0_i32 = arith.constant 0 : i32
    %c0_i32_0 = arith.constant 0 : i32
    %c0_i32_1 = arith.constant 0 : i32
    return %c0_i32, %c0_i32_0 : i32, i32
  }
  func.func @transform_6(%arg0: i32) -> (i32, i32) {
    %c0_i32 = arith.constant 0 : i32
    %c0_i32_0 = arith.constant 0 : i32
    %c0_i32_1 = arith.constant 0 : i32
    return %c0_i32, %c0_i32_0 : i32, i32
  }
  func.func @transform_7(%arg0: i32) -> (i32, i32) {
    %c0_i32 = arith.constant 0 : i32
    %c0_i32_0 = arith.constant 0 : i32
    %c0_i32_1 = arith.constant 0 : i32
    return %c0_i32, %c0_i32_0 : i32, i32
  }
  func.func @transform_8(%arg0: i32) -> (i32, i32) {
    %c0_i32 = arith.constant 0 : i32
    %c0_i32_0 = arith.constant 0 : i32
    %c0_i32_1 = arith.constant 0 : i32
    return %c0_i32, %c0_i32_0 : i32, i32
  }
  func.func @transform_9(%arg0: i32) -> (i32, i32) {
    %c0_i32 = arith.constant 0 : i32
    %c0_i32_0 = arith.constant 0 : i32
    return %arg0, %c0_i32 : i32, i32
  }
}

</mosaic_0001>

<llo_original>
// kernel: tpu_custom_call.1
$region0: #{tpu_custom_call.1}
  #allocation0 [shape = 'u32[]', space=smem, size = 0x4, offset = 0x4, fixed_abs, tag = 'smem constant byte address 0x4 - core index']
  #allocation1 [shape = 'u32[144,128]{1,0:T(1,128)}', space=vmem, size = 0x12000, scoped, tag = 'internal scratch']
  %s0 = inlined_call_operand.vmem [shape: bf16[32,512], index: 0, kind: input, shape index: {}]
  %s1 = inlined_call_operand.vmem [shape: bf16[32,16], index: 1, kind: input, shape index: {}]
  %s2 = inlined_call_operand.vmem [shape: bf16[16,128], index: 2, kind: input, shape index: {}]
  %s3 = inlined_call_operand.vmem [shape: f32[1,128], index: 3, kind: input, shape index: {}]
  %s4 = inlined_call_operand.vmem [shape: bf16[128,128], index: 4, kind: input, shape index: {}]
  %s5 = inlined_call_operand.vmem [shape: f32[1,128], index: 5, kind: input, shape index: {}]
  %s6 = inlined_call_operand.vmem [shape: bf16[512,8], index: 6, kind: input, shape index: {}]
  %s7 = inlined_call_operand.vmem [shape: bf16[128,8], index: 7, kind: input, shape index: {}]
  %s8 = inlined_call_operand.vmem [shape: f32[1,8], index: 8, kind: input, shape index: {}]
  %s9 = inlined_call_operand.vmem [shape: f32[32,8], index: 9, kind: output, shape index: {}]
  %s10 = sld [smem:[#allocation0]]
  $region69: #{tpu_custom_call.1} parent=0
    _
  %s12 = ssub.s32 1, %s10
  %s13 = scalar_select 0, %s12, %s10
  loop: start=0, step=1, limit=4
  $region2: #{tpu_custom_call.1} parent=0 // loop_pre_header
    _
  $region3: #{tpu_custom_call.1} parent=0 // loop_header
    %s15 = sphi 0, %s19
    %p16 = scmp.ge.s32.totalorder %s15, 4
    %s25 = sphi 0, %s27
    %s28 = sphi 0, %s25
    %s29 = sphi 0, %s28
    %s45 = sphi 0, %s29
    %s51 = sphi 0, %s53
    %s54 = sphi 0, %s51
    %s55 = sphi 0, %s54
    %s71 = sphi 0, %s55
    %s75 = sphi 0, %s75
    %s77 = sphi 0, %s75
    %s78 = sphi 0, %s77
    %s92 = sphi 0, %s78
    %s96 = sphi 0, %s96
    %s98 = sphi 0, %s96
    %s99 = sphi 0, %s98
    %s113 = sphi 0, %s99
    %s117 = sphi 0, %s117
    %s119 = sphi 0, %s117
    %s120 = sphi 0, %s119
    %s134 = sphi 0, %s120
    %s138 = sphi 0, %s138
    %s140 = sphi 0, %s138
    %s141 = sphi 0, %s140
    %s155 = sphi 0, %s141
    %s159 = sphi 0, %s159
    %s161 = sphi 0, %s159
    %s162 = sphi 0, %s161
    %s176 = sphi 0, %s162
    %s180 = sphi 0, %s180
    %s182 = sphi 0, %s180
    %s183 = sphi 0, %s182
    %s197 = sphi 0, %s183
    %s201 = sphi 0, %s201
    %s203 = sphi 0, %s201
    %s204 = sphi 0, %s203
    %s218 = sphi 0, %s204
    %s224 = sphi 0, %s226
    %s227 = sphi 0, %s224
    %s228 = sphi 0, %s227
    %s244 = sphi 0, %s228
  $region4: #{tpu_custom_call.1} parent=0 // loop_header_branch
    %18 = sbr.rel (%p16) target = $region8
  $region5: #{tpu_custom_call.1} parent=0 // loop_body
    %s20 = ssub.s32 %s15, 1
    %s21 = ssub.s32 %s15, 2
    %s22 = sadd.s32 %s15, 1
    %s23 = ssub.s32 %s15, %s22
    %p24 = scmp.eq.s32.totalorder %s23, 0
    %s26 = sadd.s32 %s25, 1
    %s27 = scalar_select %p24, %s25, %s26
    %p30 = pneg %p24
    %p31 = scmp.eq.s32.totalorder %s15, 1
    %p32 = por %p30, %p31
    %p33 = scmp.ne.s32.totalorder %s25, %s28
    %p34 = scmp.eq.s32.totalorder %s15, 0
    %p35 = por %p33, %p34
    %p36 = scmp.ne.s32.totalorder %s25, %s28
    %p37 = scmp.eq.s32.totalorder %s20, 1
    %p38 = por %p36, %p37
    %p39 = scmp.ne.s32.totalorder %s28, %s29
    %p40 = scmp.eq.s32.totalorder %s20, 0
    %p41 = por %p39, %p40
    %p42 = scmp.ne.s32.totalorder %s28, %s29
    %p43 = scmp.eq.s32.totalorder %s21, 1
    %p44 = por %p42, %p43
    %p46 = scmp.ne.s32.totalorder %s29, %s45
    %p47 = scmp.eq.s32.totalorder %s21, 0
    %p48 = por %p46, %p47
    %s49 = ssub.s32 %s15, %s22
    %p50 = scmp.eq.s32.totalorder %s49, 0
    %s52 = sadd.s32 %s51, 1
    %s53 = scalar_select %p50, %s51, %s52
    %p56 = pneg %p50
    %p57 = scmp.eq.s32.totalorder %s15, 1
    %p58 = por %p56, %p57
    %p59 = scmp.ne.s32.totalorder %s51, %s54
    %p60 = scmp.eq.s32.totalorder %s15, 0
    %p61 = por %p59, %p60
    %p62 = scmp.ne.s32.totalorder %s51, %s54
    %p63 = scmp.eq.s32.totalorder %s20, 1
    %p64 = por %p62, %p63
    %p65 = scmp.ne.s32.totalorder %s54, %s55
    %p66 = scmp.eq.s32.totalorder %s20, 0
    %p67 = por %p65, %p66
    %p68 = scmp.ne.s32.totalorder %s54, %s55
    %p69 = scmp.eq.s32.totalorder %s21, 1
    %p70 = por %p68, %p69
    %p72 = scmp.ne.s32.totalorder %s55, %s71
    %p73 = scmp.eq.s32.totalorder %s21, 0
    %p74 = por %p72, %p73
    %s76 = sadd.s32 %s75, 1
    %p79 = scmp.eq.s32.totalorder %s15, 1
    %p80 = scmp.ne.s32.totalorder %s75, %s77
    %p81 = scmp.eq.s32.totalorder %s15, 0
    %p82 = por %p80, %p81
    %p83 = scmp.ne.s32.totalorder %s75, %s77
    %p84 = scmp.eq.s32.totalorder %s20, 1
    %p85 = por %p83, %p84
    %p86 = scmp.ne.s32.totalorder %s77, %s78
    %p87 = scmp.eq.s32.totalorder %s20, 0
    %p88 = por %p86, %p87
    %p89 = scmp.ne.s32.totalorder %s77, %s78
    %p90 = scmp.eq.s32.totalorder %s21, 1
    %p91 = por %p89, %p90
    %p93 = scmp.ne.s32.totalorder %s78, %s92
    %p94 = scmp.eq.s32.totalorder %s21, 0
    %p95 = por %p93, %p94
    %s97 = sadd.s32 %s96, 1
    %p100 = scmp.eq.s32.totalorder %s15, 1
    %p101 = scmp.ne.s32.totalorder %s96, %s98
    %p102 = scmp.eq.s32.totalorder %s15, 0
    %p103 = por %p101, %p102
    %p104 = scmp.ne.s32.totalorder %s96, %s98
    %p105 = scmp.eq.s32.totalorder %s20, 1
    %p106 = por %p104, %p105
    %p107 = scmp.ne.s32.totalorder %s98, %s99
    %p108 = scmp.eq.s32.totalorder %s20, 0
    %p109 = por %p107, %p108
    %p110 = scmp.ne.s32.totalorder %s98, %s99
    %p111 = scmp.eq.s32.totalorder %s21, 1
    %p112 = por %p110, %p111
    %p114 = scmp.ne.s32.totalorder %s99, %s113
    %p115 = scmp.eq.s32.totalorder %s21, 0
    %p116 = por %p114, %p115
    %s118 = sadd.s32 %s117, 1
    %p121 = scmp.eq.s32.totalorder %s15, 1
    %p122 = scmp.ne.s32.totalorder %s117, %s119
    %p123 = scmp.eq.s32.totalorder %s15, 0
    %p124 = por %p122, %p123
    %p125 = scmp.ne.s32.totalorder %s117, %s119
    %p126 = scmp.eq.s32.totalorder %s20, 1
    %p127 = por %p125, %p126
    %p128 = scmp.ne.s32.totalorder %s119, %s120
    %p129 = scmp.eq.s32.totalorder %s20, 0
    %p130 = por %p128, %p129
    %p131 = scmp.ne.s32.totalorder %s119, %s120
    %p132 = scmp.eq.s32.totalorder %s21, 1
    %p133 = por %p131, %p132
    %p135 = scmp.ne.s32.totalorder %s120, %s134
    %p136 = scmp.eq.s32.totalorder %s21, 0
    %p137 = por %p135, %p136
    %s139 = sadd.s32 %s138, 1
    %p142 = scmp.eq.s32.totalorder %s15, 1
    %p143 = scmp.ne.s32.totalorder %s138, %s140
    %p144 = scmp.eq.s32.totalorder %s15, 0
    %p145 = por %p143, %p144
    %p146 = scmp.ne.s32.totalorder %s138, %s140
    %p147 = scmp.eq.s32.totalorder %s20, 1
    %p148 = por %p146, %p147
    %p149 = scmp.ne.s32.totalorder %s140, %s141
    %p150 = scmp.eq.s32.totalorder %s20, 0
    %p151 = por %p149, %p150
    %p152 = scmp.ne.s32.totalorder %s140, %s141
    %p153 = scmp.eq.s32.totalorder %s21, 1
    %p154 = por %p152, %p153
    %p156 = scmp.ne.s32.totalorder %s141, %s155
    %p157 = scmp.eq.s32.totalorder %s21, 0
    %p158 = por %p156, %p157
    %s160 = sadd.s32 %s159, 1
    %p163 = scmp.eq.s32.totalorder %s15, 1
    %p164 = scmp.ne.s32.totalorder %s159, %s161
    %p165 = scmp.eq.s32.totalorder %s15, 0
    %p166 = por %p164, %p165
    %p167 = scmp.ne.s32.totalorder %s159, %s161
    %p168 = scmp.eq.s32.totalorder %s20, 1
    %p169 = por %p167, %p168
    %p170 = scmp.ne.s32.totalorder %s161, %s162
    %p171 = scmp.eq.s32.totalorder %s20, 0
    %p172 = por %p170, %p171
    %p173 = scmp.ne.s32.totalorder %s161, %s162
    %p174 = scmp.eq.s32.totalorder %s21, 1
    %p175 = por %p173, %p174
    %p177 = scmp.ne.s32.totalorder %s162, %s176
    %p178 = scmp.eq.s32.totalorder %s21, 0
    %p179 = por %p177, %p178
    %s181 = sadd.s32 %s180, 1
    %p184 = scmp.eq.s32.totalorder %s15, 1
    %p185 = scmp.ne.s32.totalorder %s180, %s182
    %p186 = scmp.eq.s32.totalorder %s15, 0
    %p187 = por %p185, %p186
    %p188 = scmp.ne.s32.totalorder %s180, %s182
    %p189 = scmp.eq.s32.totalorder %s20, 1
    %p190 = por %p188, %p189
    %p191 = scmp.ne.s32.totalorder %s182, %s183
    %p192 = scmp.eq.s32.totalorder %s20, 0
    %p193 = por %p191, %p192
    %p194 = scmp.ne.s32.totalorder %s182, %s183
    %p195 = scmp.eq.s32.totalorder %s21, 1
    %p196 = por %p194, %p195
    %p198 = scmp.ne.s32.totalorder %s183, %s197
    %p199 = scmp.eq.s32.totalorder %s21, 0
    %p200 = por %p198, %p199
    %s202 = sadd.s32 %s201, 1
    %p205 = scmp.eq.s32.totalorder %s15, 1
    %p206 = scmp.ne.s32.totalorder %s201, %s203
    %p207 = scmp.eq.s32.totalorder %s15, 0
    %p208 = por %p206, %p207
    %p209 = scmp.ne.s32.totalorder %s201, %s203
    %p210 = scmp.eq.s32.totalorder %s20, 1
    %p211 = por %p209, %p210
    %p212 = scmp.ne.s32.totalorder %s203, %s204
    %p213 = scmp.eq.s32.totalorder %s20, 0
    %p214 = por %p212, %p213
    %p215 = scmp.ne.s32.totalorder %s203, %s204
    %p216 = scmp.eq.s32.totalorder %s21, 1
    %p217 = por %p215, %p216
    %p219 = scmp.ne.s32.totalorder %s204, %s218
    %p220 = scmp.eq.s32.totalorder %s21, 0
    %p221 = por %p219, %p220
    %s222 = ssub.s32 %s15, %s22
    %p223 = scmp.eq.s32.totalorder %s222, 0
    %s225 = sadd.s32 %s224, 1
    %s226 = scalar_select %p223, %s224, %s225
    %p229 = pneg %p223
    %p230 = scmp.eq.s32.totalorder %s15, 1
    %p231 = por %p229, %p230
    %p232 = scmp.ne.s32.totalorder %s224, %s227
    %p233 = scmp.eq.s32.totalorder %s15, 0
    %p234 = por %p232, %p233
    %p235 = scmp.ne.s32.totalorder %s224, %s227
    %p236 = scmp.eq.s32.totalorder %s20, 1
    %p237 = por %p235, %p236
    %p238 = scmp.ne.s32.totalorder %s227, %s228
    %p239 = scmp.eq.s32.totalorder %s20, 0
    %p240 = por %p238, %p239
    %p241 = scmp.ne.s32.totalorder %s227, %s228
    %p242 = scmp.eq.s32.totalorder %s21, 1
    %p243 = por %p241, %p242
    %p245 = scmp.ne.s32.totalorder %s228, %s244
    %p246 = scmp.eq.s32.totalorder %s21, 0
    %p247 = por %p245, %p246
    %p248 = scmp.le.s32.totalorder 1, %s15
    %p249 = scmp.lt.s32.totalorder %s15, 3
    %p250 = pnand %p248, %p249
    %p251 = pneg %p250
    // Predicated region
    $region9: #{tpu_custom_call.1} parent=5 // pred_check
      _
    $region10: #{tpu_custom_call.1} parent=5 // pred_check_branch
      %253 = sbr.rel (%p250) target = $region12
    $region11: #{tpu_custom_call.1} parent=5 // pred_region
      %s254 = ssub.s32 %s15, 1
      // Predicated region
      $region13: #{tpu_custom_call.1} parent=11 // pred_check
        %p255 = pneg %p88
      $region14: #{tpu_custom_call.1} parent=11 // pred_check_branch
        %257 = sbr.rel (%p255) target = $region16
      $region15: #{tpu_custom_call.1} parent=11 // pred_region
        _
      $region16: #{tpu_custom_call.1} parent=11 // pred_fallthru
        _
      // Predicated region
      $region17: #{tpu_custom_call.1} parent=11 // pred_check
        %p258 = pneg %p109
      $region18: #{tpu_custom_call.1} parent=11 // pred_check_branch
        %260 = sbr.rel (%p258) target = $region20
      $region19: #{tpu_custom_call.1} parent=11 // pred_region
        _
      $region20: #{tpu_custom_call.1} parent=11 // pred_fallthru
        _
      // Predicated region
      $region21: #{tpu_custom_call.1} parent=11 // pred_check
        %p261 = pneg %p130
      $region22: #{tpu_custom_call.1} parent=11 // pred_check_branch
        %263 = sbr.rel (%p261) target = $region24
      $region23: #{tpu_custom_call.1} parent=11 // pred_region
        _
      $region24: #{tpu_custom_call.1} parent=11 // pred_fallthru
        _
      // Predicated region
      $region25: #{tpu_custom_call.1} parent=11 // pred_check
        %p264 = pneg %p151
      $region26: #{tpu_custom_call.1} parent=11 // pred_check_branch
        %266 = sbr.rel (%p264) target = $region28
      $region27: #{tpu_custom_call.1} parent=11 // pred_region
        _
      $region28: #{tpu_custom_call.1} parent=11 // pred_fallthru
        _
      // Predicated region
      $region29: #{tpu_custom_call.1} parent=11 // pred_check
        %p267 = pneg %p172
      $region30: #{tpu_custom_call.1} parent=11 // pred_check_branch
        %269 = sbr.rel (%p267) target = $region32
      $region31: #{tpu_custom_call.1} parent=11 // pred_region
        _
      $region32: #{tpu_custom_call.1} parent=11 // pred_fallthru
        _
      // Predicated region
      $region33: #{tpu_custom_call.1} parent=11 // pred_check
        %p270 = pneg %p193
      $region34: #{tpu_custom_call.1} parent=11 // pred_check_branch
        %272 = sbr.rel (%p270) target = $region36
      $region35: #{tpu_custom_call.1} parent=11 // pred_region
        _
      $region36: #{tpu_custom_call.1} parent=11 // pred_fallthru
        _
      // Predicated region
      $region37: #{tpu_custom_call.1} parent=11 // pred_check
        %p273 = pneg %p214
      $region38: #{tpu_custom_call.1} parent=11 // pred_check_branch
        %275 = sbr.rel (%p273) target = $region40
      $region39: #{tpu_custom_call.1} parent=11 // pred_region
        _
      $region40: #{tpu_custom_call.1} parent=11 // pred_fallthru
        _
    $region12: #{tpu_custom_call.1} parent=5 // pred_fallthru
      _
    %p276 = scmp.lt.s32.totalorder %s15, 2
    // Predicated region
    $region41: #{tpu_custom_call.1} parent=5 // pred_check
      %p277 = pneg %p276
    $region42: #{tpu_custom_call.1} parent=5 // pred_check_branch
      %279 = sbr.rel (%p277) target = $region44
    $region43: #{tpu_custom_call.1} parent=5 // pred_region
      // Predicated region
      $region45: #{tpu_custom_call.1} parent=43 // pred_check
        %p280 = pneg %p35
      $region46: #{tpu_custom_call.1} parent=43 // pred_check_branch
        %282 = sbr.rel (%p280) target = $region48
      $region47: #{tpu_custom_call.1} parent=43 // pred_region
        %s283 = smul.u32 2, %s15
        %p284 = scmp.lt.s32.totalorder %s283, 3
        %s285 = scalar_select %p284, %s283, 3
        %s286 = smul.addr %s285, 4
        %s287 = smul.addr %s286, 4
        %s288 = scalar_lea.vmem %s0, %s287
        %s289 = smul.u32 2, %s15
      $region48: #{tpu_custom_call.1} parent=43 // pred_fallthru
        _
      // Predicated region
      $region49: #{tpu_custom_call.1} parent=43 // pred_check
        %p290 = pneg %p61
      $region50: #{tpu_custom_call.1} parent=43 // pred_check_branch
        %292 = sbr.rel (%p290) target = $region52
      $region51: #{tpu_custom_call.1} parent=43 // pred_region
        %s293 = smul.u32 2, %s15
        %p294 = scmp.lt.s32.totalorder %s293, 3
        %s295 = scalar_select %p294, %s293, 3
        %s296 = smul.addr %s295, 4
        %s297 = scalar_lea.vmem %s1, %s296
        %s298 = smul.u32 2, %s15
      $region52: #{tpu_custom_call.1} parent=43 // pred_fallthru
        _
    $region44: #{tpu_custom_call.1} parent=5 // pred_fallthru
      _
    %p299 = scmp.le.s32.totalorder 1, %s15
    %p300 = scmp.lt.s32.totalorder %s15, 3
    %p301 = pnand %p299, %p300
    %p302 = pneg %p301
    // Predicated region
    $region53: #{tpu_custom_call.1} parent=5 // pred_check
      _
    $region54: #{tpu_custom_call.1} parent=5 // pred_check_branch
      %304 = sbr.rel (%p301) target = $region56
    $region55: #{tpu_custom_call.1} parent=5 // pred_region
      %s305 = ssub.s32 %s15, 1
      %s306 = smul.u32 2, %s20
      %p307 = scmp.lt.s32.totalorder %s306, 3
      %s308 = scalar_select %p307, %s306, 3
      %s309 = smul.addr %s308, 4
      %s310 = smul.addr %s309, 4
      %s311 = scalar_lea.vmem %s0, %s310
      %p312 = pneg %p41
      %p313 = pneg %p38
      %s314 = smul.u32 2, %s20
      %p315 = scmp.lt.s32.totalorder %s314, 3
      %s316 = scalar_select %p315, %s314, 3
      %s317 = smul.addr %s316, 4
      %s318 = scalar_lea.vmem %s1, %s317
      %p319 = pneg %p67
      %p320 = pneg %p64
      %p321 = pneg %p88
      %p322 = pneg %p85
      %p323 = pneg %p109
      %p324 = pneg %p106
      %p325 = pneg %p130
      %p326 = pneg %p127
      %p327 = pneg %p151
      %p328 = pneg %p148
      %p329 = pneg %p172
      %p330 = pneg %p169
      %p331 = pneg %p193
      %p332 = pneg %p190
      %p333 = pneg %p214
      %p334 = pneg %p211
      %p335 = pneg %p240
      %p336 = pneg %p237
      %s337 = smul.u32 2, %s20
      %p338 = scmp.lt.s32.totalorder %s337, 3
      %s339 = scalar_select %p338, %s337, 3
      %s340 = smul.addr %s339, 8
      %s341 = scalar_lea.vmem %s9, %s340
      %s342 = smul.u32 2, %s20
      %p343 = scmp.lt.s32.totalorder %s342, 3
      %s344 = scalar_select %p343, %s342, 3
      %s345 = smul.addr %s344, 4
      %s346 = smul.addr %s345, 4
      %s347 = scalar_lea.vmem %s0, %s346
      %s348 = smul.u32 2, %s20
      %s349 = smul.u32 2, %s20
      %p350 = scmp.lt.s32.totalorder %s349, 3
      %s351 = scalar_select %p350, %s349, 3
      %s352 = smul.addr %s351, 4
      %s353 = scalar_lea.vmem %s1, %s352
      %s354 = smul.u32 2, %s20
      %s355 = smul.u32 2, %s20
      %p356 = scmp.lt.s32.totalorder %s355, 3
      %s357 = scalar_select %p356, %s355, 3
      %s358 = smul.addr %s357, 8
      %s359 = scalar_lea.vmem %s9, %s358
      %s360 = smul.u32 2, %s20
      %v362 = vld [vmem:[%s353] sm:$0xf]
      %v363 = vld [vmem:[%s353 + $0x4] sm:$0xf]
      %v364 = vld [vmem:[%s2] sm:$0xf]
      %v365 = vld [vmem:[%s2 + $0x4] sm:$0xf]
      %v366 = vld [vmem:[%s3] sm:$0x1]
      %v368 = vlaneseq
      %v369 = vshrl.u32 %v368, 7
      %v370 = vsub.s32 0, %v369
      %v371 = vrot.slane %v366, %v370
      %v375 = vunpack.c.l.b16 %v362
      %v376 = vunpack.c.l.b16 %v363
      %v377 = vpack.c.b16 %v376, %v375
      %v380 = vunpack.c.l.b16 %v364
      %v381 = vunpack.c.l.b16 %v365
      %v382 = vpack.c.b16 %v381, %v380
      %vm384 = vcmask 130048
      %v386 = vsel %vm384, %v377, 0
      %388 = vmatprep.subr.bf16.mxu0 0
      %389 = vmatpush1.bf16.msra.mxu0 0
      %390 = vmatprep.subr.bf16.mxu0 0
      %391 = vmatpush1.bf16.msra.mxu0 0
      %392 = vmatprep.subr.bf16.mxu0 0
      %393 = vmatpush1.bf16.msra.mxu0 0
      %394 = vmatprep.subr.bf16.mxu0 0
      %395 = vmatpush1.bf16.msra.mxu0 0
      %396 = vmatprep.subr.bf16.mxu0 0
      %397 = vmatpush1.bf16.msra.mxu0 0
      %398 = vmatprep.subr.bf16.mxu0 0
      %399 = vmatpush1.bf16.msra.mxu0 0
      %400 = vmatprep.subr.bf16.mxu0 0
      %401 = vmatpush1.bf16.msra.mxu0 0
      %402 = vmatprep.subr.bf16.mxu0 0
      %403 = vmatpush1.bf16.msra.mxu0 %v382
      %404 = vmatprep.subr.bf16.mxu0 0
      %405 = vmatpush2.bf16.msra.mxu0 0
      %406 = vmatprep.subr.bf16.mxu0 0
      %407 = vmatpush2.bf16.msra.mxu0 0
      %408 = vmatprep.subr.bf16.mxu0 0
      %409 = vmatpush2.bf16.msra.mxu0 0
      %410 = vmatprep.subr.bf16.mxu0 0
      %411 = vmatpush2.bf16.msra.mxu0 0
      %412 = vmatprep.subr.bf16.mxu0 0
      %413 = vmatpush2.bf16.msra.mxu0 0
      %414 = vmatprep.subr.bf16.mxu0 0
      %415 = vmatpush2.bf16.msra.mxu0 0
      %416 = vmatprep.subr.bf16.mxu0 0
      %417 = vmatpush2.bf16.msra.mxu0 0
      %418 = vmatprep.subr.bf16.mxu0 0
      %419 = vmatpush2.bf16.msra.mxu0 0
      %420 = vmatprep.mubr.bf16.mxu0 0
      %421 = vmatmul.mubr.bf16.gmra.mxu0 %v386
      %v422 = vpop.f32.mrf.mxu0
      %v423 = vadd.f32 %v371, %v422
      %v424 = vpop.f32.mrf.mxu0
      %v425 = vpop.f32.mrf.mxu0
      %v426 = vadd.f32 %v371, %v425
      %v427 = vpop.f32.mrf.mxu0
      %428 = vdwg.mxu0
      %v429 = vmax.f32 %v423, 0.0
      %v430 = vmax.f32 %v426, 0.0
      %v431 = vpack.c.bf16 %v430, %v429
      %v432 = vld [vmem:[%s4] sm:$0xf]
      %v433 = vld [vmem:[%s4 + $0x4] sm:$0xf]
      %v434 = vld [vmem:[%s4 + $0x8] sm:$0xf]
      %v435 = vld [vmem:[%s4 + $0xc] sm:$0xf]
      %v436 = vld [vmem:[%s4 + $0x10] sm:$0xf]
      %v437 = vld [vmem:[%s4 + $0x14] sm:$0xf]
      %v438 = vld [vmem:[%s4 + $0x18] sm:$0xf]
      %v439 = vld [vmem:[%s4 + $0x1c] sm:$0xf]
      %v440 = vld [vmem:[%s4 + $0x20] sm:$0xf]
      %v441 = vld [vmem:[%s4 + $0x24] sm:$0xf]
      %v442 = vld [vmem:[%s4 + $0x28] sm:$0xf]
      %v443 = vld [vmem:[%s4 + $0x2c] sm:$0xf]
      %v444 = vld [vmem:[%s4 + $0x30] sm:$0xf]
      %v445 = vld [vmem:[%s4 + $0x34] sm:$0xf]
      %v446 = vld [vmem:[%s4 + $0x38] sm:$0xf]
      %v447 = vld [vmem:[%s4 + $0x3c] sm:$0xf]
      %v448 = vld [vmem:[%s5] sm:$0x1]
      %v450 = vlaneseq
      %v451 = vshrl.u32 %v450, 7
      %v452 = vsub.s32 0, %v451
      %v453 = vrot.slane %v448, %v452
      %v471 = vunpack.c.l.b16 %v432
      %v472 = vunpack.c.l.b16 %v433
      %v473 = vunpack.c.l.b16 %v434
      %v474 = vunpack.c.l.b16 %v435
      %v475 = vunpack.c.l.b16 %v436
      %v476 = vunpack.c.l.b16 %v437
      %v477 = vunpack.c.l.b16 %v438
      %v478 = vunpack.c.l.b16 %v439
      %v479 = vunpack.c.l.b16 %v440
      %v480 = vunpack.c.l.b16 %v441
      %v481 = vunpack.c.l.b16 %v442
      %v482 = vunpack.c.l.b16 %v443
      %v483 = vunpack.c.l.b16 %v444
      %v484 = vunpack.c.l.b16 %v445
      %v485 = vunpack.c.l.b16 %v446
      %v486 = vunpack.c.l.b16 %v447
      %v487 = vpack.c.b16 %v472, %v471
      %v488 = vpack.c.b16 %v474, %v473
      %v489 = vpack.c.b16 %v476, %v475
      %v490 = vpack.c.b16 %v478, %v477
      %v491 = vpack.c.b16 %v480, %v479
      %v492 = vpack.c.b16 %v482, %v481
      %v493 = vpack.c.b16 %v484, %v483
      %v494 = vpack.c.b16 %v486, %v485
      %503 = vmatprep.subr.bf16.mxu0 0
      %504 = vmatpush1.bf16.msra.mxu0 %v494
      %505 = vmatprep.subr.bf16.mxu0 0
      %506 = vmatpush1.bf16.msra.mxu0 %v493
      %507 = vmatprep.subr.bf16.mxu0 0
      %508 = vmatpush1.bf16.msra.mxu0 %v492
      %509 = vmatprep.subr.bf16.mxu0 0
      %510 = vmatpush1.bf16.msra.mxu0 %v491
      %511 = vmatprep.subr.bf16.mxu0 0
      %512 = vmatpush1.bf16.msra.mxu0 %v490
      %513 = vmatprep.subr.bf16.mxu0 0
      %514 = vmatpush1.bf16.msra.mxu0 %v489
      %515 = vmatprep.subr.bf16.mxu0 0
      %516 = vmatpush1.bf16.msra.mxu0 %v488
      %517 = vmatprep.subr.bf16.mxu0 0
      %518 = vmatpush1.bf16.msra.mxu0 %v487
      %519 = vmatprep.subr.bf16.mxu0 0
      %520 = vmatpush2.bf16.msra.mxu0 0
      %521 = vmatprep.subr.bf16.mxu0 0
      %522 = vmatpush2.bf16.msra.mxu0 0
      %523 = vmatprep.subr.bf16.mxu0 0
      %524 = vmatpush2.bf16.msra.mxu0 0
      %525 = vmatprep.subr.bf16.mxu0 0
      %526 = vmatpush2.bf16.msra.mxu0 0
      %527 = vmatprep.subr.bf16.mxu0 0
      %528 = vmatpush2.bf16.msra.mxu0 0
      %529 = vmatprep.subr.bf16.mxu0 0
      %530 = vmatpush2.bf16.msra.mxu0 0
      %531 = vmatprep.subr.bf16.mxu0 0
      %532 = vmatpush2.bf16.msra.mxu0 0
      %533 = vmatprep.subr.bf16.mxu0 0
      %534 = vmatpush2.bf16.msra.mxu0 0
      %535 = vmatprep.mubr.bf16.mxu0 0
      %536 = vmatmul.mubr.bf16.gmra.mxu0 %v431
      %v537 = vpop.f32.mrf.mxu0
      %v538 = vadd.f32 %v453, %v537
      %v539 = vpop.f32.mrf.mxu0
      %v540 = vpop.f32.mrf.mxu0
      %v541 = vadd.f32 %v453, %v540
      %v542 = vpop.f32.mrf.mxu0
      %543 = vdwg.mxu0
      %v544 = vmax.f32 %v538, 0.0
      %v545 = vmax.f32 %v541, 0.0
      %v546 = vld [vmem:[%s347] sm:$0xff]
      %v547 = vld [vmem:[%s347 + $0x8] sm:$0xff]
      %v548 = vld [vmem:[%s347 + $0x10] sm:$0xff]
      %v549 = vld [vmem:[%s347 + $0x18] sm:$0xff]
      %v550 = vld [vmem:[%s6] sm:$0xf]
      %v551 = vld [vmem:[%s6 + $0x4] sm:$0xf]
      %v552 = vld [vmem:[%s6 + $0x8] sm:$0xf]
      %v553 = vld [vmem:[%s6 + $0xc] sm:$0xf]
      %v554 = vld [vmem:[%s6 + $0x10] sm:$0xf]
      %v555 = vld [vmem:[%s6 + $0x14] sm:$0xf]
      %v556 = vld [vmem:[%s6 + $0x18] sm:$0xf]
      %v557 = vld [vmem:[%s6 + $0x1c] sm:$0xf]
      %v558 = vld [vmem:[%s6 + $0x20] sm:$0xf]
      %v559 = vld [vmem:[%s6 + $0x24] sm:$0xf]
      %v560 = vld [vmem:[%s6 + $0x28] sm:$0xf]
      %v561 = vld [vmem:[%s6 + $0x2c] sm:$0xf]
      %v562 = vld [vmem:[%s6 + $0x30] sm:$0xf]
      %v563 = vld [vmem:[%s6 + $0x34] sm:$0xf]
      %v564 = vld [vmem:[%s6 + $0x38] sm:$0xf]
      %v565 = vld [vmem:[%s6 + $0x3c] sm:$0xf]
      %v566 = vld [vmem:[%s6 + $0x40] sm:$0xf]
      %v567 = vld [vmem:[%s6 + $0x44] sm:$0xf]
      %v568 = vld [vmem:[%s6 + $0x48] sm:$0xf]
      %v569 = vld [vmem:[%s6 + $0x4c] sm:$0xf]
      %v570 = vld [vmem:[%s6 + $0x50] sm:$0xf]
      %v571 = vld [vmem:[%s6 + $0x54] sm:$0xf]
      %v572 = vld [vmem:[%s6 + $0x58] sm:$0xf]
      %v573 = vld [vmem:[%s6 + $0x5c] sm:$0xf]
      %v574 = vld [vmem:[%s6 + $0x60] sm:$0xf]
      %v575 = vld [vmem:[%s6 + $0x64] sm:$0xf]
      %v576 = vld [vmem:[%s6 + $0x68] sm:$0xf]
      %v577 = vld [vmem:[%s6 + $0x6c] sm:$0xf]
      %v578 = vld [vmem:[%s6 + $0x70] sm:$0xf]
      %v579 = vld [vmem:[%s6 + $0x74] sm:$0xf]
      %v580 = vld [vmem:[%s6 + $0x78] sm:$0xf]
      %v581 = vld [vmem:[%s6 + $0x7c] sm:$0xf]
      %v582 = vld [vmem:[%s6 + $0x80] sm:$0xf]
      %v583 = vld [vmem:[%s6 + $0x84] sm:$0xf]
      %v584 = vld [vmem:[%s6 + $0x88] sm:$0xf]
      %v585 = vld [vmem:[%s6 + $0x8c] sm:$0xf]
      %v586 = vld [vmem:[%s6 + $0x90] sm:$0xf]
      %v587 = vld [vmem:[%s6 + $0x94] sm:$0xf]
      %v588 = vld [vmem:[%s6 + $0x98] sm:$0xf]
      %v589 = vld [vmem:[%s6 + $0x9c] sm:$0xf]
      %v590 = vld [vmem:[%s6 + $0xa0] sm:$0xf]
      %v591 = vld [vmem:[%s6 + $0xa4] sm:$0xf]
      %v592 = vld [vmem:[%s6 + $0xa8] sm:$0xf]
      %v593 = vld [vmem:[%s6 + $0xac] sm:$0xf]
      %v594 = vld [vmem:[%s6 + $0xb0] sm:$0xf]
      %v595 = vld [vmem:[%s6 + $0xb4] sm:$0xf]
      %v596 = vld [vmem:[%s6 + $0xb8] sm:$0xf]
      %v597 = vld [vmem:[%s6 + $0xbc] sm:$0xf]
      %v598 = vld [vmem:[%s6 + $0xc0] sm:$0xf]
      %v599 = vld [vmem:[%s6 + $0xc4] sm:$0xf]
      %v600 = vld [vmem:[%s6 + $0xc8] sm:$0xf]
      %v601 = vld [vmem:[%s6 + $0xcc] sm:$0xf]
      %v602 = vld [vmem:[%s6 + $0xd0] sm:$0xf]
      %v603 = vld [vmem:[%s6 + $0xd4] sm:$0xf]
      %v604 = vld [vmem:[%s6 + $0xd8] sm:$0xf]
      %v605 = vld [vmem:[%s6 + $0xdc] sm:$0xf]
      %v606 = vld [vmem:[%s6 + $0xe0] sm:$0xf]
      %v607 = vld [vmem:[%s6 + $0xe4] sm:$0xf]
      %v608 = vld [vmem:[%s6 + $0xe8] sm:$0xf]
      %v609 = vld [vmem:[%s6 + $0xec] sm:$0xf]
      %v610 = vld [vmem:[%s6 + $0xf0] sm:$0xf]
      %v611 = vld [vmem:[%s6 + $0xf4] sm:$0xf]
      %v612 = vld [vmem:[%s6 + $0xf8] sm:$0xf]
      %v613 = vld [vmem:[%s6 + $0xfc] sm:$0xf]
      %v614 = vpack.c.bf16 %v545, %v544
      %v615 = vld [vmem:[%s7] sm:$0xf]
      %v616 = vld [vmem:[%s7 + $0x4] sm:$0xf]
      %v617 = vld [vmem:[%s7 + $0x8] sm:$0xf]
      %v618 = vld [vmem:[%s7 + $0xc] sm:$0xf]
      %v619 = vld [vmem:[%s7 + $0x10] sm:$0xf]
      %v620 = vld [vmem:[%s7 + $0x14] sm:$0xf]
      %v621 = vld [vmem:[%s7 + $0x18] sm:$0xf]
      %v622 = vld [vmem:[%s7 + $0x1c] sm:$0xf]
      %v623 = vld [vmem:[%s7 + $0x20] sm:$0xf]
      %v624 = vld [vmem:[%s7 + $0x24] sm:$0xf]
      %v625 = vld [vmem:[%s7 + $0x28] sm:$0xf]
      %v626 = vld [vmem:[%s7 + $0x2c] sm:$0xf]
      %v627 = vld [vmem:[%s7 + $0x30] sm:$0xf]
      %v628 = vld [vmem:[%s7 + $0x34] sm:$0xf]
      %v629 = vld [vmem:[%s7 + $0x38] sm:$0xf]
      %v630 = vld [vmem:[%s7 + $0x3c] sm:$0xf]
      %v647 = vunpack.c.l.b16 %v615
      %v648 = vunpack.c.l.b16 %v616
      %v649 = vunpack.c.l.b16 %v617
      %v650 = vunpack.c.l.b16 %v618
      %v651 = vunpack.c.l.b16 %v619
      %v652 = vunpack.c.l.b16 %v620
      %v653 = vunpack.c.l.b16 %v621
      %v654 = vunpack.c.l.b16 %v622
      %v655 = vunpack.c.l.b16 %v623
      %v656 = vunpack.c.l.b16 %v624
      %v657 = vunpack.c.l.b16 %v625
      %v658 = vunpack.c.l.b16 %v626
      %v659 = vunpack.c.l.b16 %v627
      %v660 = vunpack.c.l.b16 %v628
      %v661 = vunpack.c.l.b16 %v629
      %v662 = vunpack.c.l.b16 %v630
      %v663 = vpack.c.b16 %v648, %v647
      %v664 = vpack.c.b16 %v650, %v649
      %v665 = vpack.c.b16 %v652, %v651
      %v666 = vpack.c.b16 %v654, %v653
      %v667 = vpack.c.b16 %v656, %v655
      %v668 = vpack.c.b16 %v658, %v657
      %v669 = vpack.c.b16 %v660, %v659
      %v670 = vpack.c.b16 %v662, %v661
      %679 = vmatprep.subr.bf16.mxu0 0
      %680 = vmatpush1.bf16.msra.mxu0 %v670
      %681 = vmatprep.subr.bf16.mxu0 0
      %682 = vmatpush1.bf16.msra.mxu0 %v669
      %683 = vmatprep.subr.bf16.mxu0 0
      %684 = vmatpush1.bf16.msra.mxu0 %v668
      %685 = vmatprep.subr.bf16.mxu0 0
      %686 = vmatpush1.bf16.msra.mxu0 %v667
      %687 = vmatprep.subr.bf16.mxu0 0
      %688 = vmatpush1.bf16.msra.mxu0 %v666
      %689 = vmatprep.subr.bf16.mxu0 0
      %690 = vmatpush1.bf16.msra.mxu0 %v665
      %691 = vmatprep.subr.bf16.mxu0 0
      %692 = vmatpush1.bf16.msra.mxu0 %v664
      %693 = vmatprep.subr.bf16.mxu0 0
      %694 = vmatpush1.bf16.msra.mxu0 %v663
      %695 = vmatprep.subr.bf16.mxu0 0
      %696 = vmatpush2.bf16.msra.mxu0 0
      %697 = vmatprep.subr.bf16.mxu0 0
      %698 = vmatpush2.bf16.msra.mxu0 0
      %699 = vmatprep.subr.bf16.mxu0 0
      %700 = vmatpush2.bf16.msra.mxu0 0
      %701 = vmatprep.subr.bf16.mxu0 0
      %702 = vmatpush2.bf16.msra.mxu0 0
      %703 = vmatprep.subr.bf16.mxu0 0
      %704 = vmatpush2.bf16.msra.mxu0 0
      %705 = vmatprep.subr.bf16.mxu0 0
      %706 = vmatpush2.bf16.msra.mxu0 0
      %707 = vmatprep.subr.bf16.mxu0 0
      %708 = vmatpush2.bf16.msra.mxu0 0
      %709 = vmatprep.subr.bf16.mxu0 0
      %710 = vmatpush2.bf16.msra.mxu0 0
      %711 = vmatprep.mubr.bf16.mxu0 0
      %712 = vmatmul.mubr.bf16.gmra.mxu0 %v614
      %v713 = vpop.f32.mrf.mxu0
      %v714 = vadd.f32 0.0, %v713
      %v715 = vpop.f32.mrf.mxu0
      %v716 = vpop.f32.mrf.mxu0
      %v717 = vadd.f32 0.0, %v716
      %v718 = vpop.f32.mrf.mxu0
      %719 = vdwg.mxu0
      %v724 = vunpack.c.l.b16 %v546
      %v725 = vunpack.c.h.b16 %v546
      %v726 = vunpack.c.l.b16 %v547
      %v727 = vunpack.c.h.b16 %v547
      %v728 = vunpack.c.l.b16 %v548
      %v729 = vunpack.c.h.b16 %v548
      %v730 = vunpack.c.l.b16 %v549
      %v731 = vunpack.c.h.b16 %v549
      %v732 = vpack.c.b16 %v728, %v724
      %v733 = vpack.c.b16 %v729, %v725
      %v734 = vpack.c.b16 %v730, %v726
      %v735 = vpack.c.b16 %v731, %v727
      %v804 = vunpack.c.l.b16 %v550
      %v805 = vunpack.c.l.b16 %v551
      %v806 = vunpack.c.l.b16 %v552
      %v807 = vunpack.c.l.b16 %v553
      %v808 = vunpack.c.l.b16 %v554
      %v809 = vunpack.c.l.b16 %v555
      %v810 = vunpack.c.l.b16 %v556
      %v811 = vunpack.c.l.b16 %v557
      %v812 = vunpack.c.l.b16 %v558
      %v813 = vunpack.c.l.b16 %v559
      %v814 = vunpack.c.l.b16 %v560
      %v815 = vunpack.c.l.b16 %v561
      %v816 = vunpack.c.l.b16 %v562
      %v817 = vunpack.c.l.b16 %v563
      %v818 = vunpack.c.l.b16 %v564
      %v819 = vunpack.c.l.b16 %v565
      %v820 = vunpack.c.l.b16 %v566
      %v821 = vunpack.c.l.b16 %v567
      %v822 = vunpack.c.l.b16 %v568
      %v823 = vunpack.c.l.b16 %v569
      %v824 = vunpack.c.l.b16 %v570
      %v825 = vunpack.c.l.b16 %v571
      %v826 = vunpack.c.l.b16 %v572
      %v827 = vunpack.c.l.b16 %v573
      %v828 = vunpack.c.l.b16 %v574
      %v829 = vunpack.c.l.b16 %v575
      %v830 = vunpack.c.l.b16 %v576
      %v831 = vunpack.c.l.b16 %v577
      %v832 = vunpack.c.l.b16 %v578
      %v833 = vunpack.c.l.b16 %v579
      %v834 = vunpack.c.l.b16 %v580
      %v835 = vunpack.c.l.b16 %v581
      %v836 = vunpack.c.l.b16 %v582
      %v837 = vunpack.c.l.b16 %v583
      %v838 = vunpack.c.l.b16 %v584
      %v839 = vunpack.c.l.b16 %v585
      %v840 = vunpack.c.l.b16 %v586
      %v841 = vunpack.c.l.b16 %v587
      %v842 = vunpack.c.l.b16 %v588
      %v843 = vunpack.c.l.b16 %v589
      %v844 = vunpack.c.l.b16 %v590
      %v845 = vunpack.c.l.b16 %v591
      %v846 = vunpack.c.l.b16 %v592
      %v847 = vunpack.c.l.b16 %v593
      %v848 = vunpack.c.l.b16 %v594
      %v849 = vunpack.c.l.b16 %v595
      %v850 = vunpack.c.l.b16 %v596
      %v851 = vunpack.c.l.b16 %v597
      %v852 = vunpack.c.l.b16 %v598
      %v853 = vunpack.c.l.b16 %v599
      %v854 = vunpack.c.l.b16 %v600
      %v855 = vunpack.c.l.b16 %v601
      %v856 = vunpack.c.l.b16 %v602
      %v857 = vunpack.c.l.b16 %v603
      %v858 = vunpack.c.l.b16 %v604
      %v859 = vunpack.c.l.b16 %v605
      %v860 = vunpack.c.l.b16 %v606
      %v861 = vunpack.c.l.b16 %v607
      %v862 = vunpack.c.l.b16 %v608
      %v863 = vunpack.c.l.b16 %v609
      %v864 = vunpack.c.l.b16 %v610
      %v865 = vunpack.c.l.b16 %v611
      %v866 = vunpack.c.l.b16 %v612
      %v867 = vunpack.c.l.b16 %v613
      %v868 = vpack.c.b16 %v805, %v804
      %v869 = vpack.c.b16 %v807, %v806
      %v870 = vpack.c.b16 %v809, %v808
      %v871 = vpack.c.b16 %v811, %v810
      %v872 = vpack.c.b16 %v813, %v812
      %v873 = vpack.c.b16 %v815, %v814
      %v874 = vpack.c.b16 %v817, %v816
      %v875 = vpack.c.b16 %v819, %v818
      %v876 = vpack.c.b16 %v821, %v820
      %v877 = vpack.c.b16 %v823, %v822
      %v878 = vpack.c.b16 %v825, %v824
      %v879 = vpack.c.b16 %v827, %v826
      %v880 = vpack.c.b16 %v829, %v828
      %v881 = vpack.c.b16 %v831, %v830
      %v882 = vpack.c.b16 %v833, %v832
      %v883 = vpack.c.b16 %v835, %v834
      %v884 = vpack.c.b16 %v837, %v836
      %v885 = vpack.c.b16 %v839, %v838
      %v886 = vpack.c.b16 %v841, %v840
      %v887 = vpack.c.b16 %v843, %v842
      %v888 = vpack.c.b16 %v845, %v844
      %v889 = vpack.c.b16 %v847, %v846
      %v890 = vpack.c.b16 %v849, %v848
      %v891 = vpack.c.b16 %v851, %v850
      %v892 = vpack.c.b16 %v853, %v852
      %v893 = vpack.c.b16 %v855, %v854
      %v894 = vpack.c.b16 %v857, %v856
      %v895 = vpack.c.b16 %v859, %v858
      %v896 = vpack.c.b16 %v861, %v860
      %v897 = vpack.c.b16 %v863, %v862
      %v898 = vpack.c.b16 %v865, %v864
      %v899 = vpack.c.b16 %v867, %v866
      %932 = vmatprep.subr.bf16.mxu0 0
      %933 = vmatpush1.bf16.msra.mxu0 %v875
      %934 = vmatprep.subr.bf16.mxu0 0
      %935 = vmatpush1.bf16.msra.mxu0 %v874
      %936 = vmatprep.subr.bf16.mxu0 0
      %937 = vmatpush1.bf16.msra.mxu0 %v873
      %938 = vmatprep.subr.bf16.mxu0 0
      %939 = vmatpush1.bf16.msra.mxu0 %v872
      %940 = vmatprep.subr.bf16.mxu0 0
      %941 = vmatpush1.bf16.msra.mxu0 %v871
      %942 = vmatprep.subr.bf16.mxu0 0
      %943 = vmatpush1.bf16.msra.mxu0 %v870
      %944 = vmatprep.subr.bf16.mxu0 0
      %945 = vmatpush1.bf16.msra.mxu0 %v869
      %946 = vmatprep.subr.bf16.mxu0 0
      %947 = vmatpush1.bf16.msra.mxu0 %v868
      %948 = vmatprep.subr.bf16.mxu0 0
      %949 = vmatpush2.bf16.msra.mxu0 %v883
      %950 = vmatprep.subr.bf16.mxu0 0
      %951 = vmatpush2.bf16.msra.mxu0 %v882
      %952 = vmatprep.subr.bf16.mxu0 0
      %953 = vmatpush2.bf16.msra.mxu0 %v881
      %954 = vmatprep.subr.bf16.mxu0 0
      %955 = vmatpush2.bf16.msra.mxu0 %v880
      %956 = vmatprep.subr.bf16.mxu0 0
      %957 = vmatpush2.bf16.msra.mxu0 %v879
      %958 = vmatprep.subr.bf16.mxu0 0
      %959 = vmatpush2.bf16.msra.mxu0 %v878
      %960 = vmatprep.subr.bf16.mxu0 0
      %961 = vmatpush2.bf16.msra.mxu0 %v877
      %962 = vmatprep.subr.bf16.mxu0 0
      %963 = vmatpush2.bf16.msra.mxu0 %v876
      %964 = vmatprep.mubr.bf16.mxu0 %v733
      %965 = vmatmul.mubr.bf16.gmra.mxu0 %v732
      %v966 = vpop.f32.mrf.mxu0
      %v967 = vadd.f32 %v714, %v966
      %v968 = vpop.f32.mrf.mxu0
      %v969 = vpop.f32.mrf.mxu0
      %v970 = vadd.f32 %v717, %v969
      %v971 = vpop.f32.mrf.mxu0
      %972 = vdwg.mxu0
      %973 = vmatprep.subr.bf16.mxu0 0
      %974 = vmatpush1.bf16.msra.mxu0 %v891
      %975 = vmatprep.subr.bf16.mxu0 0
      %976 = vmatpush1.bf16.msra.mxu0 %v890
      %977 = vmatprep.subr.bf16.mxu0 0
      %978 = vmatpush1.bf16.msra.mxu0 %v889
      %979 = vmatprep.subr.bf16.mxu0 0
      %980 = vmatpush1.bf16.msra.mxu0 %v888
      %981 = vmatprep.subr.bf16.mxu0 0
      %982 = vmatpush1.bf16.msra.mxu0 %v887
      %983 = vmatprep.subr.bf16.mxu0 0
      %984 = vmatpush1.bf16.msra.mxu0 %v886
      %985 = vmatprep.subr.bf16.mxu0 0
      %986 = vmatpush1.bf16.msra.mxu0 %v885
      %987 = vmatprep.subr.bf16.mxu0 0
      %988 = vmatpush1.bf16.msra.mxu0 %v884
      %989 = vmatprep.subr.bf16.mxu0 0
      %990 = vmatpush2.bf16.msra.mxu0 %v899
      %991 = vmatprep.subr.bf16.mxu0 0
      %992 = vmatpush2.bf16.msra.mxu0 %v898
      %993 = vmatprep.subr.bf16.mxu0 0
      %994 = vmatpush2.bf16.msra.mxu0 %v897
      %995 = vmatprep.subr.bf16.mxu0 0
      %996 = vmatpush2.bf16.msra.mxu0 %v896
      %997 = vmatprep.subr.bf16.mxu0 0
      %998 = vmatpush2.bf16.msra.mxu0 %v895
      %999 = vmatprep.subr.bf16.mxu0 0
      %1000 = vmatpush2.bf16.msra.mxu0 %v894
      %1001 = vmatprep.subr.bf16.mxu0 0
      %1002 = vmatpush2.bf16.msra.mxu0 %v893
      %1003 = vmatprep.subr.bf16.mxu0 0
      %1004 = vmatpush2.bf16.msra.mxu0 %v892
      %1005 = vmatprep.mubr.bf16.mxu0 %v735
      %1006 = vmatmul.mubr.bf16.gmra.mxu0 %v734
      %v1007 = vpop.f32.mrf.mxu0
      %v1008 = vadd.f32 %v967, %v1007
      %v1009 = vpop.f32.mrf.mxu0
      %v1010 = vpop.f32.mrf.mxu0
      %v1011 = vadd.f32 %v970, %v1010
      %v1012 = vpop.f32.mrf.mxu0
      %1013 = vdwg.mxu0
      %v1014 = vld [vmem:[%s8] sm:$0x1]
      %v1016 = vlaneseq
      %v1017 = vshrl.u32 %v1016, 7
      %v1018 = vsub.s32 0, %v1017
      %v1019 = vrot.slane %v1014, %v1018
      %v1021 = vadd.f32 %v1008, %v1019
      %v1022 = vadd.f32 %v1011, %v1019
      %vm1023 = vcmask 64512
      %1024 = vst.msk [vmem:[%s359] sm:$0xff] %vm1023, %v1021
      %1025 = vst.msk [vmem:[%s359 + $0x8] sm:$0xff] %vm1023, %v1022
      %s1026 = smul.u32 2, %s20
      %p1027 = scmp.lt.s32.totalorder %s1026, 3
      %s1028 = scalar_select %p1027, %s1026, 3
      %s1029 = smul.addr %s1028, 8
      %s1030 = scalar_lea.vmem %s9, %s1029
      // Predicated region
      $region57: #{tpu_custom_call.1} parent=55 // pred_check
        %p1031 = pneg %p237
      $region58: #{tpu_custom_call.1} parent=55 // pred_check_branch
        %1033 = sbr.rel (%p1031) target = $region60
      $region59: #{tpu_custom_call.1} parent=55 // pred_region
        %s1034 = smul.u32 2, %s20
      $region60: #{tpu_custom_call.1} parent=55 // pred_fallthru
        _
    $region56: #{tpu_custom_call.1} parent=5 // pred_fallthru
      _
    %p1035 = scmp.le.s32.totalorder 2, %s15
    // Predicated region
    $region61: #{tpu_custom_call.1} parent=5 // pred_check
      %p1036 = pneg %p1035
    $region62: #{tpu_custom_call.1} parent=5 // pred_check_branch
      %1038 = sbr.rel (%p1036) target = $region64
    $region63: #{tpu_custom_call.1} parent=5 // pred_region
      %s1039 = ssub.s32 %s15, 2
      // Predicated region
      $region65: #{tpu_custom_call.1} parent=63 // pred_check
        %p1040 = pneg %p243
      $region66: #{tpu_custom_call.1} parent=63 // pred_check_branch
        %1042 = sbr.rel (%p1040) target = $region68
      $region67: #{tpu_custom_call.1} parent=63 // pred_region
        %s1043 = smul.u32 2, %s21
        %p1044 = scmp.lt.s32.totalorder %s1043, 3
        %s1045 = scalar_select %p1044, %s1043, 3
        %s1046 = smul.addr %s1045, 8
        %s1047 = scalar_lea.vmem %s9, %s1046
      $region68: #{tpu_custom_call.1} parent=63 // pred_fallthru
        _
    $region64: #{tpu_custom_call.1} parent=5 // pred_fallthru
      _
  $region6: #{tpu_custom_call.1} parent=0 // loop_footer
    %s19 = sadd.s32 1, %s15
  $region7: #{tpu_custom_call.1} parent=0 // loop_footer_branch
    %14 = sbr.rel target = $region3
  $region8: #{tpu_custom_call.1} parent=0 // loop_exit
    _

</llo_original>
